<compile_context>
chip_gen: v7x
topology: tpu7x:2x2x1
jax: 0.10.0
libtpu: 0.0.40
codegen_flags: <defaults>
</compile_context>

<pallas_src>
import functools

import jax
import jax.numpy as jnp
from jax import lax
from jax.experimental import pallas as pl
from jax.experimental.pallas import tpu as pltpu

_LANES = 128
_SUBLANES = 8
_CHUNK_ROWS = 256            # inner fold chunk: 256x128 f32 = 32 vregs live
_MAX_TILE_ROWS = 8192        # 4 MiB f32 (2 MiB bf16) per grid block
_MIN_PALLAS_ROWS = _CHUNK_ROWS   # below this (or non-128-divisible) -> XLA


def _sumsq_kernel(x_ref, o_ref, *, rows, tile_rows):
    """Accumulate sum(x*x) of a lane-dense (rows, 128) array.

    x_ref: VMEM (tile_rows, 128) block of the parameter, native dtype.
    o_ref: VMEM f32 (8, 128) resident accumulator (same block all grid steps).
    rows / tile_rows are static Python ints baked in per call.
    """
    b = pl.program_id(0)

    @pl.when(b == 0)
    def _init():
        o_ref[...] = jnp.zeros_like(o_ref)

    row0 = b * tile_rows
    n_chunks = tile_rows // _CHUNK_ROWS
    need_mask = (rows % tile_rows) != 0          # static python bool

    if need_mask:
        # Hoisted out of the loop (broadcast_in_dim is not CSE'd by JAX).
        local_row = lax.broadcasted_iota(jnp.int32, (_CHUNK_ROWS, _LANES), 0)

    def body(c, acc):
        start = pl.multiple_of(c * _CHUNK_ROWS, _CHUNK_ROWS)
        x = x_ref[pl.ds(start, _CHUNK_ROWS), :].astype(jnp.float32)
        if need_mask:
            # Zero rows past the logical end of the array (boundary block).
            gr = row0 + start + local_row
            x = jnp.where(gr < rows, x, 0.0)
        # Layout-preserving (CHUNK,128)->(8,128) fold: pure VPU adds hidden
        # under the HBM stream; the expensive cross-lane/sublane reduce runs
        # once per parameter outside the kernel on a tiny (8,128) array.
        return acc + jnp.sum(
            (x * x).reshape(_CHUNK_ROWS // _SUBLANES, _SUBLANES, _LANES),
            axis=0)

    acc = lax.fori_loop(0, n_chunks, body,
                        jnp.zeros((_SUBLANES, _LANES), jnp.float32),
                        unroll=True)
    o_ref[...] += acc


def _pallas_sumsq_2d(x2d, rows, tile_rows):
    """Sum of squares of a (rows, 128) lane-dense array via one pallas_call."""
    grid = pl.cdiv(rows, tile_rows)
    out = pl.pallas_call(
        functools.partial(_sumsq_kernel, rows=rows, tile_rows=tile_rows),
        out_shape=jax.ShapeDtypeStruct((_SUBLANES, _LANES), jnp.float32),
        grid=(grid,),
        in_specs=[pl.BlockSpec((tile_rows, _LANES), lambda b: (b, 0))],
        out_specs=pl.BlockSpec((_SUBLANES, _LANES), lambda b: (0, 0)),
        compiler_params=pltpu.CompilerParams(
            dimension_semantics=("arbitrary",),      # reduction axis
            vmem_limit_bytes=28 * 1024 * 1024),      # covers v5e's 16 MiB default
    )(x2d)
    # Single cheap cross-lane/sublane reduce on a 4 KiB array.
    return jnp.sum(out)


def _param_sumsq(w):
    """f32 sum of squares of one parameter tensor (any shape / dtype)."""
    size = int(w.size)
    rows = size // _LANES
    if size % _LANES != 0 or rows < _MIN_PALLAS_ROWS:
        # Small or not lane-divisible: plain XLA single-pass reduction
        # (avoids any pre-kernel copy / zero padding for tiny tensors).
        x = w.reshape(-1).astype(jnp.float32)
        return jnp.sum(x * x)
    x2d = w.reshape(rows, _LANES)                 # free for contiguous arrays
    tile_rows = min(_MAX_TILE_ROWS, (rows // _CHUNK_ROWS) * _CHUNK_ROWS)
    return _pallas_sumsq_2d(x2d, rows, tile_rows)


def regul_loss(named_params, regul_lambda):
    """Pallas-backed equivalent of RegulLoss.forward(model)."""
    norms = []
    for name, p in named_params.items():
        if "weight" in name:
            norms.append(jnp.sqrt(_param_sumsq(p)))
    if not norms:
        return jnp.float32(0.0)
    return jnp.float32(regul_lambda) * jnp.sum(jnp.stack(norms))


def _reference(named_params, regul_lambda):
    reg = jnp.float32(0.0)
    for name, param in named_params.items():
        if "weight" in name:
            p = param.astype(jnp.float32)
            reg = reg + jnp.sqrt(jnp.sum(p * p))
    return jnp.float32(regul_lambda) * reg


if __name__ == "__main__":
    # Deterministic synthetic "model" parameters. Only names containing
    # 'weight' contribute, matching model.named_parameters() filtering.
    key = jax.random.PRNGKey(0)
    ks = jax.random.split(key, 7)
    named_params = {
        # Large, lane-divisible weights -> Pallas streaming kernel.
        "fc1.weight": jax.random.normal(ks[0], (256, 512), jnp.float32),
        # bf16 weight, 205*640 = 131200 elems -> 1025 rows: exercises the
        # native-dtype path, a multi-block grid and the boundary-row mask.
        "fc2.weight": jax.random.normal(ks[1], (205, 640),
                                        jnp.float32).astype(jnp.bfloat16),
        # Small / odd-shaped 'weight' tensors -> XLA fallback path.
        "conv1.weight": jax.random.normal(ks[2], (4, 4, 3, 3), jnp.float32),
        "norm1.weight": jax.random.normal(ks[3], (32,), jnp.float32),
        "head.weight": jax.random.normal(ks[4], (10, 33), jnp.float32),
        # Non-'weight' parameters: must be ignored.
        "conv1.bias": jax.random.normal(ks[5], (4,), jnp.float32),
        "fc1.bias": jax.random.normal(ks[6], (256,), jnp.float32),
    }
    regul_lambda = 0.01

    loss = jax.block_until_ready(regul_loss(named_params, regul_lambda))
    ref = jax.block_until_ready(_reference(named_params, regul_lambda))

    assert jnp.allclose(loss, ref, rtol=1e-5, atol=1e-5), (loss, ref)
    print("KERNEL_OK")
</pallas_src>

<mosaic_0001>
module attributes {stable_mosaic.version = 11 : i64} {
  func.func @_sumsq_kernel(%arg0: i32, %arg1: memref<1024x128xf32, #tpu.memory_space<vmem>>, %arg2: memref<8x128xf32, #tpu.memory_space<vmem>>) attributes {dimension_semantics = [#tpu.dimension_semantics<arbitrary>], iteration_bounds = array<i64: 1>, scalar_prefetch = 0 : i64, scratch_operands = 0 : i64, tpu.core_type = #tpu.core_type<tc>, window_params = [{transform_indices = @transform_0, window_bounds = array<i64: 1024, 128>}, {pipeline_mode = #tpu.pipeline_mode<synchronous>, transform_indices = @transform_1, window_bounds = array<i64: 8, 128>}]} {
    %c0_i32 = arith.constant 0 : i32
    %0 = arith.cmpi eq, %arg0, %c0_i32 : i32
    %1 = arith.extui %0 : i1 to i32
    %c0_i32_0 = arith.constant 0 : i32
    %2 = arith.cmpi ne, %1, %c0_i32_0 : i32
    scf.if %2 {
      %cst_16 = arith.constant 0.000000e+00 : f32
      %39 = vector.broadcast %cst_16 : f32 to vector<8x128xf32>
      %c0_17 = arith.constant 0 : index
      %c0_18 = arith.constant 0 : index
      %40 = vector.load %arg2[%c0_17, %c0_18] : memref<8x128xf32, #tpu.memory_space<vmem>>, vector<8x128xf32>
      tpu.vector_store %arg2[%c0_17, %c0_18], %39 {strides = array<i32>} : memref<8x128xf32, #tpu.memory_space<vmem>>, vector<8x128xf32>,
    } else {
    }
    %cst = arith.constant 0.000000e+00 : f32
    %3 = vector.broadcast %cst : f32 to vector<8x128xf32>
    %c0_i32_1 = arith.constant 0 : i32
    %c256_i32 = arith.constant 256 : i32
    %4 = arith.muli %c0_i32_1, %c256_i32 : i32
    %5 = tpu.assume_multiple %4, 256 : i32
    %6 = arith.index_cast %5 : i32 to index
    %c0 = arith.constant 0 : index
    %7 = vector.load %arg1[%6, %c0] : memref<1024x128xf32, #tpu.memory_space<vmem>>, vector<256x128xf32>
    %8 = arith.mulf %7, %7 : vector<256x128xf32>
    %9 = vector.shape_cast %8 : vector<256x128xf32> to vector<32x8x128xf32>
    %cst_2 = arith.constant dense<0.000000e+00> : vector<8x128xf32>
    %10 = vector.multi_reduction <add>, %9, %cst_2 [0] : vector<32x8x128xf32> to vector<8x128xf32>
    %11 = arith.addf %3, %10 : vector<8x128xf32>
    %c1_i32 = arith.constant 1 : i32
    %c256_i32_3 = arith.constant 256 : i32
    %12 = arith.muli %c1_i32, %c256_i32_3 : i32
    %13 = tpu.assume_multiple %12, 256 : i32
    %14 = arith.index_cast %13 : i32 to index
    %c0_4 = arith.constant 0 : index
    %15 = vector.load %arg1[%14, %c0_4] : memref<1024x128xf32, #tpu.memory_space<vmem>>, vector<256x128xf32>
    %16 = arith.mulf %15, %15 : vector<256x128xf32>
    %17 = vector.shape_cast %16 : vector<256x128xf32> to vector<32x8x128xf32>
    %cst_5 = arith.constant dense<0.000000e+00> : vector<8x128xf32>
    %18 = vector.multi_reduction <add>, %17, %cst_5 [0] : vector<32x8x128xf32> to vector<8x128xf32>
    %19 = arith.addf %11, %18 : vector<8x128xf32>
    %c2_i32 = arith.constant 2 : i32
    %c256_i32_6 = arith.constant 256 : i32
    %20 = arith.muli %c2_i32, %c256_i32_6 : i32
    %21 = tpu.assume_multiple %20, 256 : i32
    %22 = arith.index_cast %21 : i32 to index
    %c0_7 = arith.constant 0 : index
    %23 = vector.load %arg1[%22, %c0_7] : memref<1024x128xf32, #tpu.memory_space<vmem>>, vector<256x128xf32>
    %24 = arith.mulf %23, %23 : vector<256x128xf32>
    %25 = vector.shape_cast %24 : vector<256x128xf32> to vector<32x8x128xf32>
    %cst_8 = arith.constant dense<0.000000e+00> : vector<8x128xf32>
    %26 = vector.multi_reduction <add>, %25, %cst_8 [0] : vector<32x8x128xf32> to vector<8x128xf32>
    %27 = arith.addf %19, %26 : vector<8x128xf32>
    %c3_i32 = arith.constant 3 : i32
    %c256_i32_9 = arith.constant 256 : i32
    %28 = arith.muli %c3_i32, %c256_i32_9 : i32
    %29 = tpu.assume_multiple %28, 256 : i32
    %30 = arith.index_cast %29 : i32 to index
    %c0_10 = arith.constant 0 : index
    %31 = vector.load %arg1[%30, %c0_10] : memref<1024x128xf32, #tpu.memory_space<vmem>>, vector<256x128xf32>
    %32 = arith.mulf %31, %31 : vector<256x128xf32>
    %33 = vector.shape_cast %32 : vector<256x128xf32> to vector<32x8x128xf32>
    %cst_11 = arith.constant dense<0.000000e+00> : vector<8x128xf32>
    %34 = vector.multi_reduction <add>, %33, %cst_11 [0] : vector<32x8x128xf32> to vector<8x128xf32>
    %35 = arith.addf %27, %34 : vector<8x128xf32>
    %c4_i32 = arith.constant 4 : i32
    %c0_12 = arith.constant 0 : index
    %c0_13 = arith.constant 0 : index
    %36 = vector.load %arg2[%c0_12, %c0_13] : memref<8x128xf32, #tpu.memory_space<vmem>>, vector<8x128xf32>
    %37 = arith.addf %36, %35 : vector<8x128xf32>
    %c0_14 = arith.constant 0 : index
    %c0_15 = arith.constant 0 : index
    %38 = vector.load %arg2[%c0_14, %c0_15] : memref<8x128xf32, #tpu.memory_space<vmem>>, vector<8x128xf32>
    tpu.vector_store %arg2[%c0_14, %c0_15], %37 {strides = array<i32>} : memref<8x128xf32, #tpu.memory_space<vmem>>, vector<8x128xf32>,
    return
  }
  func.func @transform_0(%arg0: i32) -> (i32, i32) {
    %c0_i32 = arith.constant 0 : i32
    %c0_i32_0 = arith.constant 0 : i32
    return %arg0, %c0_i32 : i32, i32
  }
  func.func @transform_1(%arg0: i32) -> (i32, i32) {
    %c0_i32 = arith.constant 0 : i32
    %c0_i32_0 = arith.constant 0 : i32
    %c0_i32_1 = arith.constant 0 : i32
    return %c0_i32, %c0_i32_0 : i32, i32
  }
}

</mosaic_0001>

<llo_original>
// kernel: tpu_custom_call.1
$region0: #{tpu_custom_call.1}
  #allocation0 [shape = 'u32[]', space=smem, size = 0x4, offset = 0x4, fixed_abs, tag = 'smem constant byte address 0x4 - core index']
  #allocation1 [shape = 'u32[144,128]{1,0:T(1,128)}', space=vmem, size = 0x12000, scoped, tag = 'internal scratch']
  %s0 = inlined_call_operand.hbm [shape: f32[1024,128], index: 0, kind: input, shape index: {}]
  %s1 = inlined_call_operand.hbm [shape: f32[8,128], index: 1, kind: output, shape index: {}]
  %s2 = sld [smem:[#allocation0]]
  $region22: #{tpu_custom_call.1} parent=0
    _
  %s4 = ssub.s32 1, %s2
  %s5 = scalar_select 0, %s4, %s2
  $region1: #{tpu_custom_call.1} parent=0
    #allocation2 [shape = 'u8[524288]{0}', space=vmem, size = 0x80000, scoped, tag = 'input window, operand 0, single buffered']
    #allocation3 [shape = 's32[1]{0}', space=sflag, size = 0x4, scoped, tag = 'scoped memory for tpu_custom_call.1']
    #allocation4 [shape = 's32[1]{0}', space=sflag, size = 0x4, scoped, tag = 'scoped memory for tpu_custom_call.1']
    #allocation5 [shape = 'u8[4096]{0}', space=vmem, size = 0x1000, scoped, tag = 'output window, operand 0, single buffered']
    %6 = vsyncpa [#allocation3], 0
    %7 = vsyncpa [#allocation4], 0
    // Predicated region
    $region2: #{tpu_custom_call.1} parent=1 // pred_check
      _
    $region3: #{tpu_custom_call.1} parent=1 // pred_check_branch
      %9 = sbr.rel (0) target = $region5
    $region4: #{tpu_custom_call.1} parent=1 // pred_region
      %s11 = ssub.s32 16384, 16384
      %12 = vsyncadd [#allocation3], %s11
      %s13 = sshll.u32 [#allocation2], 4
      %s14 = int_to_ptr.vmem [resolvable:$true] %s13
      %19 = dma.hbm_to_vmem [thread:$0]  %s0, 16384, %s14, [#allocation3], 128, 128, 8
    $region5: #{tpu_custom_call.1} parent=1 // pred_fallthru
      _
    // Predicated region
    $region6: #{tpu_custom_call.1} parent=1 // pred_check
      _
    $region7: #{tpu_custom_call.1} parent=1 // pred_check_branch
      %21 = sbr.rel (0) target = $region9
    $region8: #{tpu_custom_call.1} parent=1 // pred_region
      %22 = dma.done [#allocation3], 16384
    $region9: #{tpu_custom_call.1} parent=1 // pred_fallthru
      _
    %p23 = scmp.eq.s32.totalorder 0, 0
    // Predicated region
    $region10: #{tpu_custom_call.1} parent=1 // pred_check
      %p24 = pneg %p23
    $region11: #{tpu_custom_call.1} parent=1 // pred_check_branch
      %26 = sbr.rel (%p24) target = $region13
    $region12: #{tpu_custom_call.1} parent=1 // pred_region
      %27 = vst [vmem:[#allocation5] sm:$0xff] 0.0
    $region13: #{tpu_custom_call.1} parent=1 // pred_fallthru
      _
    %v28 = vld [vmem:[#allocation2] sm:$0xff]
    %v29 = vld [vmem:[#allocation2 + $0x8] sm:$0xff]
    %v30 = vld [vmem:[#allocation2 + $0x10] sm:$0xff]
    %v31 = vld [vmem:[#allocation2 + $0x18] sm:$0xff]
    %v32 = vld [vmem:[#allocation2 + $0x20] sm:$0xff]
    %v33 = vld [vmem:[#allocation2 + $0x28] sm:$0xff]
    %v34 = vld [vmem:[#allocation2 + $0x30] sm:$0xff]
    %v35 = vld [vmem:[#allocation2 + $0x38] sm:$0xff]
    %v36 = vld [vmem:[#allocation2 + $0x40] sm:$0xff]
    %v37 = vld [vmem:[#allocation2 + $0x48] sm:$0xff]
    %v38 = vld [vmem:[#allocation2 + $0x50] sm:$0xff]
    %v39 = vld [vmem:[#allocation2 + $0x58] sm:$0xff]
    %v40 = vld [vmem:[#allocation2 + $0x60] sm:$0xff]
    %v41 = vld [vmem:[#allocation2 + $0x68] sm:$0xff]
    %v42 = vld [vmem:[#allocation2 + $0x70] sm:$0xff]
    %v43 = vld [vmem:[#allocation2 + $0x78] sm:$0xff]
    %v44 = vld [vmem:[#allocation2 + $0x80] sm:$0xff]
    %v45 = vld [vmem:[#allocation2 + $0x88] sm:$0xff]
    %v46 = vld [vmem:[#allocation2 + $0x90] sm:$0xff]
    %v47 = vld [vmem:[#allocation2 + $0x98] sm:$0xff]
    %v48 = vld [vmem:[#allocation2 + $0xa0] sm:$0xff]
    %v49 = vld [vmem:[#allocation2 + $0xa8] sm:$0xff]
    %v50 = vld [vmem:[#allocation2 + $0xb0] sm:$0xff]
    %v51 = vld [vmem:[#allocation2 + $0xb8] sm:$0xff]
    %v52 = vld [vmem:[#allocation2 + $0xc0] sm:$0xff]
    %v53 = vld [vmem:[#allocation2 + $0xc8] sm:$0xff]
    %v54 = vld [vmem:[#allocation2 + $0xd0] sm:$0xff]
    %v55 = vld [vmem:[#allocation2 + $0xd8] sm:$0xff]
    %v56 = vld [vmem:[#allocation2 + $0xe0] sm:$0xff]
    %v57 = vld [vmem:[#allocation2 + $0xe8] sm:$0xff]
    %v58 = vld [vmem:[#allocation2 + $0xf0] sm:$0xff]
    %v59 = vld [vmem:[#allocation2 + $0xf8] sm:$0xff]
    %v60 = vmul.f32 %v28, %v28
    %v61 = vmul.f32 %v29, %v29
    %v62 = vmul.f32 %v30, %v30
    %v63 = vmul.f32 %v31, %v31
    %v64 = vmul.f32 %v32, %v32
    %v65 = vmul.f32 %v33, %v33
    %v66 = vmul.f32 %v34, %v34
    %v67 = vmul.f32 %v35, %v35
    %v68 = vmul.f32 %v36, %v36
    %v69 = vmul.f32 %v37, %v37
    %v70 = vmul.f32 %v38, %v38
    %v71 = vmul.f32 %v39, %v39
    %v72 = vmul.f32 %v40, %v40
    %v73 = vmul.f32 %v41, %v41
    %v74 = vmul.f32 %v42, %v42
    %v75 = vmul.f32 %v43, %v43
    %v76 = vmul.f32 %v44, %v44
    %v77 = vmul.f32 %v45, %v45
    %v78 = vmul.f32 %v46, %v46
    %v79 = vmul.f32 %v47, %v47
    %v80 = vmul.f32 %v48, %v48
    %v81 = vmul.f32 %v49, %v49
    %v82 = vmul.f32 %v50, %v50
    %v83 = vmul.f32 %v51, %v51
    %v84 = vmul.f32 %v52, %v52
    %v85 = vmul.f32 %v53, %v53
    %v86 = vmul.f32 %v54, %v54
    %v87 = vmul.f32 %v55, %v55
    %v88 = vmul.f32 %v56, %v56
    %v89 = vmul.f32 %v57, %v57
    %v90 = vmul.f32 %v58, %v58
    %v91 = vmul.f32 %v59, %v59
    %v92 = vadd.f32 %v60, %v61
    %v93 = vadd.f32 %v92, %v62
    %v94 = vadd.f32 %v93, %v63
    %v95 = vadd.f32 %v94, %v64
    %v96 = vadd.f32 %v95, %v65
    %v97 = vadd.f32 %v96, %v66
    %v98 = vadd.f32 %v97, %v67
    %v99 = vadd.f32 %v98, %v68
    %v100 = vadd.f32 %v99, %v69
    %v101 = vadd.f32 %v100, %v70
    %v102 = vadd.f32 %v101, %v71
    %v103 = vadd.f32 %v102, %v72
    %v104 = vadd.f32 %v103, %v73
    %v105 = vadd.f32 %v104, %v74
    %v106 = vadd.f32 %v105, %v75
    %v107 = vadd.f32 %v106, %v76
    %v108 = vadd.f32 %v107, %v77
    %v109 = vadd.f32 %v108, %v78
    %v110 = vadd.f32 %v109, %v79
    %v111 = vadd.f32 %v110, %v80
    %v112 = vadd.f32 %v111, %v81
    %v113 = vadd.f32 %v112, %v82
    %v114 = vadd.f32 %v113, %v83
    %v115 = vadd.f32 %v114, %v84
    %v116 = vadd.f32 %v115, %v85
    %v117 = vadd.f32 %v116, %v86
    %v118 = vadd.f32 %v117, %v87
    %v119 = vadd.f32 %v118, %v88
    %v120 = vadd.f32 %v119, %v89
    %v121 = vadd.f32 %v120, %v90
    %v122 = vadd.f32 %v121, %v91
    %v123 = vadd.f32 %v122, 0.0
    %s124 = scalar_lea.vmem [#allocation2], 256
    %v125 = vld [vmem:[%s124] sm:$0xff]
    %v126 = vld [vmem:[%s124 + $0x8] sm:$0xff]
    %v127 = vld [vmem:[%s124 + $0x10] sm:$0xff]
    %v128 = vld [vmem:[%s124 + $0x18] sm:$0xff]
    %v129 = vld [vmem:[%s124 + $0x20] sm:$0xff]
    %v130 = vld [vmem:[%s124 + $0x28] sm:$0xff]
    %v131 = vld [vmem:[%s124 + $0x30] sm:$0xff]
    %v132 = vld [vmem:[%s124 + $0x38] sm:$0xff]
    %v133 = vld [vmem:[%s124 + $0x40] sm:$0xff]
    %v134 = vld [vmem:[%s124 + $0x48] sm:$0xff]
    %v135 = vld [vmem:[%s124 + $0x50] sm:$0xff]
    %v136 = vld [vmem:[%s124 + $0x58] sm:$0xff]
    %v137 = vld [vmem:[%s124 + $0x60] sm:$0xff]
    %v138 = vld [vmem:[%s124 + $0x68] sm:$0xff]
    %v139 = vld [vmem:[%s124 + $0x70] sm:$0xff]
    %v140 = vld [vmem:[%s124 + $0x78] sm:$0xff]
    %v141 = vld [vmem:[%s124 + $0x80] sm:$0xff]
    %v142 = vld [vmem:[%s124 + $0x88] sm:$0xff]
    %v143 = vld [vmem:[%s124 + $0x90] sm:$0xff]
    %v144 = vld [vmem:[%s124 + $0x98] sm:$0xff]
    %v145 = vld [vmem:[%s124 + $0xa0] sm:$0xff]
    %v146 = vld [vmem:[%s124 + $0xa8] sm:$0xff]
    %v147 = vld [vmem:[%s124 + $0xb0] sm:$0xff]
    %v148 = vld [vmem:[%s124 + $0xb8] sm:$0xff]
    %v149 = vld [vmem:[%s124 + $0xc0] sm:$0xff]
    %v150 = vld [vmem:[%s124 + $0xc8] sm:$0xff]
    %v151 = vld [vmem:[%s124 + $0xd0] sm:$0xff]
    %v152 = vld [vmem:[%s124 + $0xd8] sm:$0xff]
    %v153 = vld [vmem:[%s124 + $0xe0] sm:$0xff]
    %v154 = vld [vmem:[%s124 + $0xe8] sm:$0xff]
    %v155 = vld [vmem:[%s124 + $0xf0] sm:$0xff]
    %v156 = vld [vmem:[%s124 + $0xf8] sm:$0xff]
    %v157 = vmul.f32 %v125, %v125
    %v158 = vmul.f32 %v126, %v126
    %v159 = vmul.f32 %v127, %v127
    %v160 = vmul.f32 %v128, %v128
    %v161 = vmul.f32 %v129, %v129
    %v162 = vmul.f32 %v130, %v130
    %v163 = vmul.f32 %v131, %v131
    %v164 = vmul.f32 %v132, %v132
    %v165 = vmul.f32 %v133, %v133
    %v166 = vmul.f32 %v134, %v134
    %v167 = vmul.f32 %v135, %v135
    %v168 = vmul.f32 %v136, %v136
    %v169 = vmul.f32 %v137, %v137
    %v170 = vmul.f32 %v138, %v138
    %v171 = vmul.f32 %v139, %v139
    %v172 = vmul.f32 %v140, %v140
    %v173 = vmul.f32 %v141, %v141
    %v174 = vmul.f32 %v142, %v142
    %v175 = vmul.f32 %v143, %v143
    %v176 = vmul.f32 %v144, %v144
    %v177 = vmul.f32 %v145, %v145
    %v178 = vmul.f32 %v146, %v146
    %v179 = vmul.f32 %v147, %v147
    %v180 = vmul.f32 %v148, %v148
    %v181 = vmul.f32 %v149, %v149
    %v182 = vmul.f32 %v150, %v150
    %v183 = vmul.f32 %v151, %v151
    %v184 = vmul.f32 %v152, %v152
    %v185 = vmul.f32 %v153, %v153
    %v186 = vmul.f32 %v154, %v154
    %v187 = vmul.f32 %v155, %v155
    %v188 = vmul.f32 %v156, %v156
    %v189 = vadd.f32 %v157, %v158
    %v190 = vadd.f32 %v189, %v159
    %v191 = vadd.f32 %v190, %v160
    %v192 = vadd.f32 %v191, %v161
    %v193 = vadd.f32 %v192, %v162
    %v194 = vadd.f32 %v193, %v163
    %v195 = vadd.f32 %v194, %v164
    %v196 = vadd.f32 %v195, %v165
    %v197 = vadd.f32 %v196, %v166
    %v198 = vadd.f32 %v197, %v167
    %v199 = vadd.f32 %v198, %v168
    %v200 = vadd.f32 %v199, %v169
    %v201 = vadd.f32 %v200, %v170
    %v202 = vadd.f32 %v201, %v171
    %v203 = vadd.f32 %v202, %v172
    %v204 = vadd.f32 %v203, %v173
    %v205 = vadd.f32 %v204, %v174
    %v206 = vadd.f32 %v205, %v175
    %v207 = vadd.f32 %v206, %v176
    %v208 = vadd.f32 %v207, %v177
    %v209 = vadd.f32 %v208, %v178
    %v210 = vadd.f32 %v209, %v179
    %v211 = vadd.f32 %v210, %v180
    %v212 = vadd.f32 %v211, %v181
    %v213 = vadd.f32 %v212, %v182
    %v214 = vadd.f32 %v213, %v183
    %v215 = vadd.f32 %v214, %v184
    %v216 = vadd.f32 %v215, %v185
    %v217 = vadd.f32 %v216, %v186
    %v218 = vadd.f32 %v217, %v187
    %v219 = vadd.f32 %v218, %v188
    %v220 = vadd.f32 %v123, %v219
    %s221 = scalar_lea.vmem [#allocation2], 512
    %v222 = vld [vmem:[%s221] sm:$0xff]
    %v223 = vld [vmem:[%s221 + $0x8] sm:$0xff]
    %v224 = vld [vmem:[%s221 + $0x10] sm:$0xff]
    %v225 = vld [vmem:[%s221 + $0x18] sm:$0xff]
    %v226 = vld [vmem:[%s221 + $0x20] sm:$0xff]
    %v227 = vld [vmem:[%s221 + $0x28] sm:$0xff]
    %v228 = vld [vmem:[%s221 + $0x30] sm:$0xff]
    %v229 = vld [vmem:[%s221 + $0x38] sm:$0xff]
    %v230 = vld [vmem:[%s221 + $0x40] sm:$0xff]
    %v231 = vld [vmem:[%s221 + $0x48] sm:$0xff]
    %v232 = vld [vmem:[%s221 + $0x50] sm:$0xff]
    %v233 = vld [vmem:[%s221 + $0x58] sm:$0xff]
    %v234 = vld [vmem:[%s221 + $0x60] sm:$0xff]
    %v235 = vld [vmem:[%s221 + $0x68] sm:$0xff]
    %v236 = vld [vmem:[%s221 + $0x70] sm:$0xff]
    %v237 = vld [vmem:[%s221 + $0x78] sm:$0xff]
    %v238 = vld [vmem:[%s221 + $0x80] sm:$0xff]
    %v239 = vld [vmem:[%s221 + $0x88] sm:$0xff]
    %v240 = vld [vmem:[%s221 + $0x90] sm:$0xff]
    %v241 = vld [vmem:[%s221 + $0x98] sm:$0xff]
    %v242 = vld [vmem:[%s221 + $0xa0] sm:$0xff]
    %v243 = vld [vmem:[%s221 + $0xa8] sm:$0xff]
    %v244 = vld [vmem:[%s221 + $0xb0] sm:$0xff]
    %v245 = vld [vmem:[%s221 + $0xb8] sm:$0xff]
    %v246 = vld [vmem:[%s221 + $0xc0] sm:$0xff]
    %v247 = vld [vmem:[%s221 + $0xc8] sm:$0xff]
    %v248 = vld [vmem:[%s221 + $0xd0] sm:$0xff]
    %v249 = vld [vmem:[%s221 + $0xd8] sm:$0xff]
    %v250 = vld [vmem:[%s221 + $0xe0] sm:$0xff]
    %v251 = vld [vmem:[%s221 + $0xe8] sm:$0xff]
    %v252 = vld [vmem:[%s221 + $0xf0] sm:$0xff]
    %v253 = vld [vmem:[%s221 + $0xf8] sm:$0xff]
    %v254 = vmul.f32 %v222, %v222
    %v255 = vmul.f32 %v223, %v223
    %v256 = vmul.f32 %v224, %v224
    %v257 = vmul.f32 %v225, %v225
    %v258 = vmul.f32 %v226, %v226
    %v259 = vmul.f32 %v227, %v227
    %v260 = vmul.f32 %v228, %v228
    %v261 = vmul.f32 %v229, %v229
    %v262 = vmul.f32 %v230, %v230
    %v263 = vmul.f32 %v231, %v231
    %v264 = vmul.f32 %v232, %v232
    %v265 = vmul.f32 %v233, %v233
    %v266 = vmul.f32 %v234, %v234
    %v267 = vmul.f32 %v235, %v235
    %v268 = vmul.f32 %v236, %v236
    %v269 = vmul.f32 %v237, %v237
    %v270 = vmul.f32 %v238, %v238
    %v271 = vmul.f32 %v239, %v239
    %v272 = vmul.f32 %v240, %v240
    %v273 = vmul.f32 %v241, %v241
    %v274 = vmul.f32 %v242, %v242
    %v275 = vmul.f32 %v243, %v243
    %v276 = vmul.f32 %v244, %v244
    %v277 = vmul.f32 %v245, %v245
    %v278 = vmul.f32 %v246, %v246
    %v279 = vmul.f32 %v247, %v247
    %v280 = vmul.f32 %v248, %v248
    %v281 = vmul.f32 %v249, %v249
    %v282 = vmul.f32 %v250, %v250
    %v283 = vmul.f32 %v251, %v251
    %v284 = vmul.f32 %v252, %v252
    %v285 = vmul.f32 %v253, %v253
    %v286 = vadd.f32 %v254, %v255
    %v287 = vadd.f32 %v286, %v256
    %v288 = vadd.f32 %v287, %v257
    %v289 = vadd.f32 %v288, %v258
    %v290 = vadd.f32 %v289, %v259
    %v291 = vadd.f32 %v290, %v260
    %v292 = vadd.f32 %v291, %v261
    %v293 = vadd.f32 %v292, %v262
    %v294 = vadd.f32 %v293, %v263
    %v295 = vadd.f32 %v294, %v264
    %v296 = vadd.f32 %v295, %v265
    %v297 = vadd.f32 %v296, %v266
    %v298 = vadd.f32 %v297, %v267
    %v299 = vadd.f32 %v298, %v268
    %v300 = vadd.f32 %v299, %v269
    %v301 = vadd.f32 %v300, %v270
    %v302 = vadd.f32 %v301, %v271
    %v303 = vadd.f32 %v302, %v272
    %v304 = vadd.f32 %v303, %v273
    %v305 = vadd.f32 %v304, %v274
    %v306 = vadd.f32 %v305, %v275
    %v307 = vadd.f32 %v306, %v276
    %v308 = vadd.f32 %v307, %v277
    %v309 = vadd.f32 %v308, %v278
    %v310 = vadd.f32 %v309, %v279
    %v311 = vadd.f32 %v310, %v280
    %v312 = vadd.f32 %v311, %v281
    %v313 = vadd.f32 %v312, %v282
    %v314 = vadd.f32 %v313, %v283
    %v315 = vadd.f32 %v314, %v284
    %v316 = vadd.f32 %v315, %v285
    %v317 = vadd.f32 %v220, %v316
    %s318 = scalar_lea.vmem [#allocation2], 768
    %v319 = vld [vmem:[%s318] sm:$0xff]
    %v320 = vld [vmem:[%s318 + $0x8] sm:$0xff]
    %v321 = vld [vmem:[%s318 + $0x10] sm:$0xff]
    %v322 = vld [vmem:[%s318 + $0x18] sm:$0xff]
    %v323 = vld [vmem:[%s318 + $0x20] sm:$0xff]
    %v324 = vld [vmem:[%s318 + $0x28] sm:$0xff]
    %v325 = vld [vmem:[%s318 + $0x30] sm:$0xff]
    %v326 = vld [vmem:[%s318 + $0x38] sm:$0xff]
    %v327 = vld [vmem:[%s318 + $0x40] sm:$0xff]
    %v328 = vld [vmem:[%s318 + $0x48] sm:$0xff]
    %v329 = vld [vmem:[%s318 + $0x50] sm:$0xff]
    %v330 = vld [vmem:[%s318 + $0x58] sm:$0xff]
    %v331 = vld [vmem:[%s318 + $0x60] sm:$0xff]
    %v332 = vld [vmem:[%s318 + $0x68] sm:$0xff]
    %v333 = vld [vmem:[%s318 + $0x70] sm:$0xff]
    %v334 = vld [vmem:[%s318 + $0x78] sm:$0xff]
    %v335 = vld [vmem:[%s318 + $0x80] sm:$0xff]
    %v336 = vld [vmem:[%s318 + $0x88] sm:$0xff]
    %v337 = vld [vmem:[%s318 + $0x90] sm:$0xff]
    %v338 = vld [vmem:[%s318 + $0x98] sm:$0xff]
    %v339 = vld [vmem:[%s318 + $0xa0] sm:$0xff]
    %v340 = vld [vmem:[%s318 + $0xa8] sm:$0xff]
    %v341 = vld [vmem:[%s318 + $0xb0] sm:$0xff]
    %v342 = vld [vmem:[%s318 + $0xb8] sm:$0xff]
    %v343 = vld [vmem:[%s318 + $0xc0] sm:$0xff]
    %v344 = vld [vmem:[%s318 + $0xc8] sm:$0xff]
    %v345 = vld [vmem:[%s318 + $0xd0] sm:$0xff]
    %v346 = vld [vmem:[%s318 + $0xd8] sm:$0xff]
    %v347 = vld [vmem:[%s318 + $0xe0] sm:$0xff]
    %v348 = vld [vmem:[%s318 + $0xe8] sm:$0xff]
    %v349 = vld [vmem:[%s318 + $0xf0] sm:$0xff]
    %v350 = vld [vmem:[%s318 + $0xf8] sm:$0xff]
    %v351 = vmul.f32 %v319, %v319
    %v352 = vmul.f32 %v320, %v320
    %v353 = vmul.f32 %v321, %v321
    %v354 = vmul.f32 %v322, %v322
    %v355 = vmul.f32 %v323, %v323
    %v356 = vmul.f32 %v324, %v324
    %v357 = vmul.f32 %v325, %v325
    %v358 = vmul.f32 %v326, %v326
    %v359 = vmul.f32 %v327, %v327
    %v360 = vmul.f32 %v328, %v328
    %v361 = vmul.f32 %v329, %v329
    %v362 = vmul.f32 %v330, %v330
    %v363 = vmul.f32 %v331, %v331
    %v364 = vmul.f32 %v332, %v332
    %v365 = vmul.f32 %v333, %v333
    %v366 = vmul.f32 %v334, %v334
    %v367 = vmul.f32 %v335, %v335
    %v368 = vmul.f32 %v336, %v336
    %v369 = vmul.f32 %v337, %v337
    %v370 = vmul.f32 %v338, %v338
    %v371 = vmul.f32 %v339, %v339
    %v372 = vmul.f32 %v340, %v340
    %v373 = vmul.f32 %v341, %v341
    %v374 = vmul.f32 %v342, %v342
    %v375 = vmul.f32 %v343, %v343
    %v376 = vmul.f32 %v344, %v344
    %v377 = vmul.f32 %v345, %v345
    %v378 = vmul.f32 %v346, %v346
    %v379 = vmul.f32 %v347, %v347
    %v380 = vmul.f32 %v348, %v348
    %v381 = vmul.f32 %v349, %v349
    %v382 = vmul.f32 %v350, %v350
    %v383 = vadd.f32 %v351, %v352
    %v384 = vadd.f32 %v383, %v353
    %v385 = vadd.f32 %v384, %v354
    %v386 = vadd.f32 %v385, %v355
    %v387 = vadd.f32 %v386, %v356
    %v388 = vadd.f32 %v387, %v357
    %v389 = vadd.f32 %v388, %v358
    %v390 = vadd.f32 %v389, %v359
    %v391 = vadd.f32 %v390, %v360
    %v392 = vadd.f32 %v391, %v361
    %v393 = vadd.f32 %v392, %v362
    %v394 = vadd.f32 %v393, %v363
    %v395 = vadd.f32 %v394, %v364
    %v396 = vadd.f32 %v395, %v365
    %v397 = vadd.f32 %v396, %v366
    %v398 = vadd.f32 %v397, %v367
    %v399 = vadd.f32 %v398, %v368
    %v400 = vadd.f32 %v399, %v369
    %v401 = vadd.f32 %v400, %v370
    %v402 = vadd.f32 %v401, %v371
    %v403 = vadd.f32 %v402, %v372
    %v404 = vadd.f32 %v403, %v373
    %v405 = vadd.f32 %v404, %v374
    %v406 = vadd.f32 %v405, %v375
    %v407 = vadd.f32 %v406, %v376
    %v408 = vadd.f32 %v407, %v377
    %v409 = vadd.f32 %v408, %v378
    %v410 = vadd.f32 %v409, %v379
    %v411 = vadd.f32 %v410, %v380
    %v412 = vadd.f32 %v411, %v381
    %v413 = vadd.f32 %v412, %v382
    %v414 = vadd.f32 %v317, %v413
    %v415 = vld [vmem:[#allocation5] sm:$0xff]
    %v416 = vadd.f32 %v415, %v414
    %417 = vst [vmem:[#allocation5] sm:$0xff] %v416
    // Predicated region
    $region14: #{tpu_custom_call.1} parent=1 // pred_check
      _
    $region15: #{tpu_custom_call.1} parent=1 // pred_check_branch
      %419 = sbr.rel (0) target = $region17
    $region16: #{tpu_custom_call.1} parent=1 // pred_region
      %s421 = ssub.s32 128, 128
      %422 = vsyncadd [#allocation4], %s421
      %s424 = sshll.u32 [#allocation5], 4
      %s425 = int_to_ptr.vmem [resolvable:$true] %s424
      %427 = dma.vmem_to_hbm [thread:$0]  %s425, 128, %s1, [#allocation4]
    $region17: #{tpu_custom_call.1} parent=1 // pred_fallthru
      _
    // Predicated region
    $region18: #{tpu_custom_call.1} parent=1 // pred_check
      _
    $region19: #{tpu_custom_call.1} parent=1 // pred_check_branch
      %429 = sbr.rel (0) target = $region21
    $region20: #{tpu_custom_call.1} parent=1 // pred_region
      %430 = dma.done [#allocation4], 128
    $region21: #{tpu_custom_call.1} parent=1 // pred_fallthru
      _
    %431 = vsyncpa [#allocation3], 1
    %432 = vsyncpa [#allocation4], 1

</llo_original>
